<compile_context>
chip_gen: v7x
topology: tpu7x:2x2x1
jax: 0.10.0
libtpu: 0.0.40
codegen_flags: <defaults>
</compile_context>

<pallas_src>
import functools

import jax
import jax.numpy as jnp
from jax.experimental import pallas as pl
from jax.experimental.pallas import tpu as pltpu


def _round_up(n, m):
    return ((n + m - 1) // m) * m


def _glaf_kernel(x_ref, w_ref, o_ref, *, hw, hwp, compute_dtype):
    """Fused GLAF core for one image.

    x_ref : (1, Cp, HWp)    image, channels on sublanes, spatial on lanes (zero padded)
    w_ref : (Cp + 8, Cp)    rows [0, C): conv0 weight; row Cp: composed conv1 weight (w1 @ w0)
    o_ref : (1, Cp, HWp)
    """
    cp = o_ref.shape[1]
    x = x_ref[0].astype(compute_dtype)                                   # (Cp, HWp)

    # conv0 (+ fused conv1 logits): single MXU matmul, f32 accumulation.
    y_ext = jnp.dot(w_ref[...], x, preferred_element_type=jnp.float32)   # (Cp+8, HWp) f32
    y = y_ext[:cp]                                                        # (Cp, HWp) f32
    a = y_ext[cp:cp + 1]                                                  # (1, HWp) lane-dense logits

    # Softmax over the spatial (lane) axis, masking padded spatial columns (static branch).
    if hwp != hw:
        col = jax.lax.broadcasted_iota(jnp.int32, (1, hwp), 1)
        a = jnp.where(col < hw, a, -jnp.inf)
    a = a - jnp.max(a, axis=1, keepdims=True)
    e = jnp.exp(a)
    s = e / jnp.sum(e, axis=1, keepdims=True)                             # (1, HWp) f32

    # Global context on the MXU: ctx[c] = sum_hw y[c, hw] * s[hw]  ->  y @ s^T.
    ctx = jax.lax.dot_general(y, s, (((1,), (1,)), ((), ())),
                              preferred_element_type=jnp.float32)         # (Cp, 1) f32

    o_ref[0] = (y * ctx).astype(o_ref.dtype)


@functools.partial(jax.jit, static_argnames=("mode", "compute_dtype", "vmem_limit_bytes"))
def glaf_forward(x, w0, w1, *, mode="ds1", compute_dtype=jnp.bfloat16, vmem_limit_bytes=None):
    """GLAF forward (default mode 'ds1': no down/up-sample tail).

    x : [B, C, H, W]  NCHW, like PyTorch.
    w0: [C, C]        conv0.weight[:, :, 0, 0]  (out_ch, in_ch)
    w1: [C]           conv1.weight[0, :, 0, 0]
    """
    if mode in ("ds", "us"):
        # TODO(synk): 'ds' (4x4/s2 Conv2d) and 'us' (4x4/s2 ConvTranspose2d) tails are not
        # ported; the module default mode='ds1' takes neither branch.
        raise NotImplementedError("GLAF Pallas port only supports the default mode ('ds1').")

    b, c, h, w = x.shape
    hw = h * w
    out_dtype = x.dtype

    # Pad channels to a sublane multiple (8) and spatial to a lane multiple (128).
    cp = _round_up(c, 8)
    hwp = _round_up(hw, 128)
    cpe = cp + 8                          # extra (aligned) row block holding the logit row

    # NCHW -> [B, C, HW] is a free reshape; pad only if the problem is not already aligned.
    x3 = x.reshape(b, c, hw)
    if cp != c or hwp != hw:
        x3 = jnp.pad(x3, ((0, 0), (0, cp - c), (0, hwp - hw)))

    # Fused weight: rows [0, c) = w0, row cp = w1 @ w0 (conv1 composed onto conv0's output).
    w0f = w0.astype(jnp.float32)
    w1_eff = jnp.dot(w1.astype(jnp.float32).reshape(1, c), w0f)           # (1, C)
    w_ext = jnp.zeros((cpe, cp), jnp.float32)
    w_ext = w_ext.at[:c, :c].set(w0f)
    w_ext = w_ext.at[cp, :c].set(w1_eff[0])
    w_ext = w_ext.astype(compute_dtype)

    # Per-step VMEM budget (double-buffered image in/out + f32 y_ext temps + weights).
    x_bytes = cp * hwp * jnp.dtype(x.dtype).itemsize
    o_bytes = cp * hwp * jnp.dtype(out_dtype).itemsize
    acc_bytes = cpe * hwp * 4 * 4
    w_bytes = cpe * cp * jnp.dtype(compute_dtype).itemsize * 2
    need = 2 * (x_bytes + o_bytes) + acc_bytes + w_bytes + (2 << 20)
    if vmem_limit_bytes is None:
        # 64 MiB cap keeps the request valid on v7x; override for huge images on 128-MiB parts.
        vmem_limit_bytes = int(min(max(need, 32 << 20), 64 << 20))

    kernel = functools.partial(_glaf_kernel, hw=hw, hwp=hwp, compute_dtype=compute_dtype)

    out = pl.pallas_call(
        kernel,
        out_shape=jax.ShapeDtypeStruct((b, cp, hwp), out_dtype),
        grid_spec=pltpu.PrefetchScalarGridSpec(
            num_scalar_prefetch=0,
            grid=(b,),
            in_specs=[
                pl.BlockSpec((1, cp, hwp), lambda i: (i, 0, 0)),   # one image per step
                pl.BlockSpec((cpe, cp), lambda i: (0, 0)),         # fused weights (resident)
            ],
            out_specs=pl.BlockSpec((1, cp, hwp), lambda i: (i, 0, 0)),
        ),
        compiler_params=pltpu.CompilerParams(
            dimension_semantics=("parallel",),   # batch shards across v7x's 2 TensorCores
            vmem_limit_bytes=vmem_limit_bytes,
        ),
    )(x3, w_ext)

    # Unpad (no-op when already aligned) and restore NCHW — no transpose needed.
    out = out[:, :c, :hw]
    return out.reshape(b, c, h, w)


def glaf_reference(x, w0, w1):
    """Pure-JAX reference mirroring the PyTorch forward (mode='ds1')."""
    b, c, h, w_ = x.shape
    hw = h * w_
    hi = jax.lax.Precision.HIGHEST
    y0 = jnp.einsum("oi,bihw->bohw", w0, x, precision=hi)
    logits = jnp.einsum("i,bihw->bhw", w1, y0, precision=hi).reshape(b, hw)
    s = jax.nn.softmax(logits, axis=-1)
    ctx = jnp.einsum("bcs,bs->bc", y0.reshape(b, c, hw), s, precision=hi)
    return y0 * ctx[:, :, None, None]


def init_params(key, planes):
    """Deterministic init mimicking nn.Conv2d defaults (kaiming-uniform-ish)."""
    k0, k1 = jax.random.split(key)
    bound = 1.0 / (planes ** 0.5)   # fan_in = planes * 1 * 1
    w0 = jax.random.uniform(k0, (planes, planes), jnp.float32, -bound, bound)  # (out, in)
    w1 = jax.random.uniform(k1, (planes,), jnp.float32, -bound, bound)
    return w0, w1


if __name__ == "__main__":
    key = jax.random.PRNGKey(0)
    kx, kp, kx2, kp2 = jax.random.split(key, 4)

    # Main config: batch=2, planes=4, 16x16.
    batch, planes, height, width = 2, 4, 16, 16
    x = jax.random.normal(kx, (batch, planes, height, width), dtype=jnp.float32)
    w0, w1 = init_params(kp, planes)
    y_ref = glaf_reference(x, w0, w1)

    # 1) f32 compute path — tight check.
    y_f32 = jax.block_until_ready(glaf_forward(x, w0, w1, compute_dtype=jnp.float32))
    assert y_f32.shape == y_ref.shape
    assert jnp.allclose(y_f32, y_ref, atol=1e-4, rtol=1e-4), float(jnp.max(jnp.abs(y_f32 - y_ref)))

    # 2) Default bf16 compute path (MXU-native) — looser tolerance.
    y_bf16 = jax.block_until_ready(glaf_forward(x, w0, w1))
    assert jnp.allclose(y_bf16, y_ref, atol=1e-1, rtol=1e-1), float(jnp.max(jnp.abs(y_bf16 - y_ref)))

    # 3) Non-aligned channels / spatial (exercises the pad + softmax-mask path).
    planes2, h2, w2 = 3, 5, 7
    x2 = jax.random.normal(kx2, (1, planes2, h2, w2), dtype=jnp.float32)
    w0b, w1b = init_params(kp2, planes2)
    y2 = jax.block_until_ready(glaf_forward(x2, w0b, w1b, compute_dtype=jnp.float32))
    y2_ref = glaf_reference(x2, w0b, w1b)
    assert jnp.allclose(y2, y2_ref, atol=1e-4, rtol=1e-4), float(jnp.max(jnp.abs(y2 - y2_ref)))

    print("KERNEL_OK")
</pallas_src>

<mosaic_0001>
module attributes {stable_mosaic.version = 11 : i64} {
  func.func @_glaf_kernel(%arg0: i32, %arg1: memref<1x8x256xf32, #tpu.memory_space<vmem>>, %arg2: memref<16x8xf32, #tpu.memory_space<vmem>>, %arg3: memref<1x8x256xf32, #tpu.memory_space<vmem>>) attributes {dimension_semantics = [#tpu.dimension_semantics<parallel>], iteration_bounds = array<i64: 2>, scalar_prefetch = 0 : i64, scratch_operands = 0 : i64, tpu.core_type = #tpu.core_type<tc>, window_params = [{transform_indices = @transform_0, window_bounds = array<i64: 1, 8, 256>}, {pipeline_mode = #tpu.pipeline_mode<synchronous>, transform_indices = @transform_1, window_bounds = array<i64: 16, 8>}, {transform_indices = @transform_2, window_bounds = array<i64: 1, 8, 256>}]} {
    %c0 = arith.constant 0 : index
    %c0_0 = arith.constant 0 : index
    %c0_1 = arith.constant 0 : index
    %0 = vector.load %arg1[%c0, %c0_0, %c0_1] : memref<1x8x256xf32, #tpu.memory_space<vmem>>, vector<1x8x256xf32>
    %1 = vector.shape_cast %0 : vector<1x8x256xf32> to vector<8x256xf32>
    %c0_2 = arith.constant 0 : index
    %c0_3 = arith.constant 0 : index
    %2 = vector.load %arg2[%c0_2, %c0_3] : memref<16x8xf32, #tpu.memory_space<vmem>>, vector<16x8xf32>
    %cst = arith.constant dense<0.000000e+00> : vector<16x256xf32>
    %3 = tpu.matmul %2, %1, %cst {dimension_numbers = #tpu.dot_dimension_numbers<[1], [0], [0], [1], [0, 0, 1, 1], [], []>} : vector<16x8xf32>, vector<8x256xf32>, vector<16x256xf32> -> vector<16x256xf32>
    %4 = vector.extract_strided_slice %3 {offsets = [0, 0], sizes = [8, 256], strides = [1, 1]} : vector<16x256xf32> to vector<8x256xf32>
    %5 = vector.extract_strided_slice %3 {offsets = [8, 0], sizes = [1, 256], strides = [1, 1]} : vector<16x256xf32> to vector<1x256xf32>
    %cst_4 = arith.constant dense<0xFF800000> : vector<1xf32>
    %6 = vector.multi_reduction <maximumf>, %5, %cst_4 [1] : vector<1x256xf32> to vector<1xf32>
    %7 = vector.shape_cast %6 : vector<1xf32> to vector<1x1xf32>
    %8 = vector.broadcast %7 : vector<1x1xf32> to vector<1x256xf32>
    %9 = arith.subf %5, %8 : vector<1x256xf32>
    %10 = math.exp %9 : vector<1x256xf32>
    %cst_5 = arith.constant dense<0.000000e+00> : vector<1xf32>
    %11 = vector.multi_reduction <add>, %10, %cst_5 [1] : vector<1x256xf32> to vector<1xf32>
    %12 = vector.shape_cast %11 : vector<1xf32> to vector<1x1xf32>
    %13 = vector.broadcast %12 : vector<1x1xf32> to vector<1x256xf32>
    %14 = arith.divf %10, %13 : vector<1x256xf32>
    %cst_6 = arith.constant dense<0.000000e+00> : vector<8x1xf32>
    %15 = tpu.matmul %4, %14, %cst_6 {dimension_numbers = #tpu.dot_dimension_numbers<[1], [1], [0], [0], [0, 0, 1, 0], [], []>} : vector<8x256xf32>, vector<1x256xf32>, vector<8x1xf32> -> vector<8x1xf32>
    %16 = vector.broadcast %15 : vector<8x1xf32> to vector<8x256xf32>
    %17 = arith.mulf %4, %16 : vector<8x256xf32>
    %c0_7 = arith.constant 0 : index
    %c0_8 = arith.constant 0 : index
    %c0_9 = arith.constant 0 : index
    %18 = vector.load %arg3[%c0_7, %c0_8, %c0_9] : memref<1x8x256xf32, #tpu.memory_space<vmem>>, vector<1x8x256xf32>
    %19 = vector.shape_cast %18 : vector<1x8x256xf32> to vector<8x256xf32>
    %20 = vector.shape_cast %17 : vector<8x256xf32> to vector<1x8x256xf32>
    tpu.vector_store %arg3[%c0_7, %c0_8, %c0_9], %20 {strides = array<i32>} : memref<1x8x256xf32, #tpu.memory_space<vmem>>, vector<1x8x256xf32>,
    return
  }
  func.func @transform_0(%arg0: i32) -> (i32, i32, i32) {
    %c0_i32 = arith.constant 0 : i32
    %c0_i32_0 = arith.constant 0 : i32
    %c0_i32_1 = arith.constant 0 : i32
    return %arg0, %c0_i32, %c0_i32_0 : i32, i32, i32
  }
  func.func @transform_1(%arg0: i32) -> (i32, i32) {
    %c0_i32 = arith.constant 0 : i32
    %c0_i32_0 = arith.constant 0 : i32
    %c0_i32_1 = arith.constant 0 : i32
    return %c0_i32, %c0_i32_0 : i32, i32
  }
  func.func @transform_2(%arg0: i32) -> (i32, i32, i32) {
    %c0_i32 = arith.constant 0 : i32
    %c0_i32_0 = arith.constant 0 : i32
    %c0_i32_1 = arith.constant 0 : i32
    return %arg0, %c0_i32, %c0_i32_0 : i32, i32, i32
  }
}

</mosaic_0001>

<llo_original>
// kernel: glaf_forward.1
$region0: #{glaf_forward.1}
  #allocation0 [shape = 'u32[]', space=smem, size = 0x4, offset = 0x4, fixed_abs, tag = 'smem constant byte address 0x4 - core index']
  #allocation1 [shape = 'u32[144,128]{1,0:T(1,128)}', space=vmem, size = 0x12000, scoped, tag = 'internal scratch']
  %s0 = inlined_call_operand.vmem [shape: f32[2,8,256], index: 0, kind: input, shape index: {}]
  %s1 = inlined_call_operand.vmem [shape: f32[16,8], index: 1, kind: input, shape index: {}]
  %s2 = inlined_call_operand.vmem [shape: f32[2,8,256], index: 2, kind: output, shape index: {}]
  %s3 = sld [smem:[#allocation0]]
  $region41: #{glaf_forward.1} parent=0
    _
  %s5 = ssub.s32 1, %s3
  %s6 = scalar_select 0, %s5, %s3
  loop: start=0, step=1, limit=4
  $region2: #{glaf_forward.1} parent=0 // loop_pre_header
    _
  $region3: #{glaf_forward.1} parent=0 // loop_header
    %s8 = sphi 0, %s12
    %p9 = scmp.ge.s32.totalorder %s8, 4
    %s18 = sphi 0, %s20
    %s21 = sphi 0, %s18
    %s22 = sphi 0, %s21
    %s38 = sphi 0, %s22
    %s42 = sphi 0, %s42
    %s44 = sphi 0, %s42
    %s45 = sphi 0, %s44
    %s59 = sphi 0, %s45
    %s65 = sphi 0, %s67
    %s68 = sphi 0, %s65
    %s69 = sphi 0, %s68
    %s85 = sphi 0, %s69
  $region4: #{glaf_forward.1} parent=0 // loop_header_branch
    %11 = sbr.rel (%p9) target = $region8
  $region5: #{glaf_forward.1} parent=0 // loop_body
    %s13 = ssub.s32 %s8, 1
    %s14 = ssub.s32 %s8, 2
    %s15 = sadd.s32 %s8, 1
    %s16 = ssub.s32 %s8, %s15
    %p17 = scmp.eq.s32.totalorder %s16, 0
    %s19 = sadd.s32 %s18, 1
    %s20 = scalar_select %p17, %s18, %s19
    %p23 = pneg %p17
    %p24 = scmp.eq.s32.totalorder %s8, 1
    %p25 = por %p23, %p24
    %p26 = scmp.ne.s32.totalorder %s18, %s21
    %p27 = scmp.eq.s32.totalorder %s8, 0
    %p28 = por %p26, %p27
    %p29 = scmp.ne.s32.totalorder %s18, %s21
    %p30 = scmp.eq.s32.totalorder %s13, 1
    %p31 = por %p29, %p30
    %p32 = scmp.ne.s32.totalorder %s21, %s22
    %p33 = scmp.eq.s32.totalorder %s13, 0
    %p34 = por %p32, %p33
    %p35 = scmp.ne.s32.totalorder %s21, %s22
    %p36 = scmp.eq.s32.totalorder %s14, 1
    %p37 = por %p35, %p36
    %p39 = scmp.ne.s32.totalorder %s22, %s38
    %p40 = scmp.eq.s32.totalorder %s14, 0
    %p41 = por %p39, %p40
    %s43 = sadd.s32 %s42, 1
    %p46 = scmp.eq.s32.totalorder %s8, 1
    %p47 = scmp.ne.s32.totalorder %s42, %s44
    %p48 = scmp.eq.s32.totalorder %s8, 0
    %p49 = por %p47, %p48
    %p50 = scmp.ne.s32.totalorder %s42, %s44
    %p51 = scmp.eq.s32.totalorder %s13, 1
    %p52 = por %p50, %p51
    %p53 = scmp.ne.s32.totalorder %s44, %s45
    %p54 = scmp.eq.s32.totalorder %s13, 0
    %p55 = por %p53, %p54
    %p56 = scmp.ne.s32.totalorder %s44, %s45
    %p57 = scmp.eq.s32.totalorder %s14, 1
    %p58 = por %p56, %p57
    %p60 = scmp.ne.s32.totalorder %s45, %s59
    %p61 = scmp.eq.s32.totalorder %s14, 0
    %p62 = por %p60, %p61
    %s63 = ssub.s32 %s8, %s15
    %p64 = scmp.eq.s32.totalorder %s63, 0
    %s66 = sadd.s32 %s65, 1
    %s67 = scalar_select %p64, %s65, %s66
    %p70 = pneg %p64
    %p71 = scmp.eq.s32.totalorder %s8, 1
    %p72 = por %p70, %p71
    %p73 = scmp.ne.s32.totalorder %s65, %s68
    %p74 = scmp.eq.s32.totalorder %s8, 0
    %p75 = por %p73, %p74
    %p76 = scmp.ne.s32.totalorder %s65, %s68
    %p77 = scmp.eq.s32.totalorder %s13, 1
    %p78 = por %p76, %p77
    %p79 = scmp.ne.s32.totalorder %s68, %s69
    %p80 = scmp.eq.s32.totalorder %s13, 0
    %p81 = por %p79, %p80
    %p82 = scmp.ne.s32.totalorder %s68, %s69
    %p83 = scmp.eq.s32.totalorder %s14, 1
    %p84 = por %p82, %p83
    %p86 = scmp.ne.s32.totalorder %s69, %s85
    %p87 = scmp.eq.s32.totalorder %s14, 0
    %p88 = por %p86, %p87
    %p89 = scmp.le.s32.totalorder 1, %s8
    %p90 = scmp.lt.s32.totalorder %s8, 3
    %p91 = pnand %p89, %p90
    %p92 = pneg %p91
    // Predicated region
    $region9: #{glaf_forward.1} parent=5 // pred_check
      _
    $region10: #{glaf_forward.1} parent=5 // pred_check_branch
      %94 = sbr.rel (%p91) target = $region12
    $region11: #{glaf_forward.1} parent=5 // pred_region
      %s95 = ssub.s32 %s8, 1
      // Predicated region
      $region13: #{glaf_forward.1} parent=11 // pred_check
        %p96 = pneg %p55
      $region14: #{glaf_forward.1} parent=11 // pred_check_branch
        %98 = sbr.rel (%p96) target = $region16
      $region15: #{glaf_forward.1} parent=11 // pred_region
        _
      $region16: #{glaf_forward.1} parent=11 // pred_fallthru
        _
    $region12: #{glaf_forward.1} parent=5 // pred_fallthru
      _
    %p99 = scmp.lt.s32.totalorder %s8, 2
    // Predicated region
    $region17: #{glaf_forward.1} parent=5 // pred_check
      %p100 = pneg %p99
    $region18: #{glaf_forward.1} parent=5 // pred_check_branch
      %102 = sbr.rel (%p100) target = $region20
    $region19: #{glaf_forward.1} parent=5 // pred_region
      // Predicated region
      $region21: #{glaf_forward.1} parent=19 // pred_check
        %p103 = pneg %p28
      $region22: #{glaf_forward.1} parent=19 // pred_check_branch
        %105 = sbr.rel (%p103) target = $region24
      $region23: #{glaf_forward.1} parent=19 // pred_region
        %p106 = scmp.lt.s32.totalorder %s8, 1
        %s107 = scalar_select %p106, %s8, 1
        %s108 = smul.addr %s107, 2
        %s109 = smul.addr %s108, 8
        %s110 = scalar_lea.vmem %s0, %s109
      $region24: #{glaf_forward.1} parent=19 // pred_fallthru
        _
    $region20: #{glaf_forward.1} parent=5 // pred_fallthru
      _
    %p111 = scmp.le.s32.totalorder 1, %s8
    %p112 = scmp.lt.s32.totalorder %s8, 3
    %p113 = pnand %p111, %p112
    %p114 = pneg %p113
    // Predicated region
    $region25: #{glaf_forward.1} parent=5 // pred_check
      _
    $region26: #{glaf_forward.1} parent=5 // pred_check_branch
      %116 = sbr.rel (%p113) target = $region28
    $region27: #{glaf_forward.1} parent=5 // pred_region
      %s117 = ssub.s32 %s8, 1
      %p118 = scmp.lt.s32.totalorder %s13, 1
      %s119 = scalar_select %p118, %s13, 1
      %s120 = smul.addr %s119, 2
      %s121 = smul.addr %s120, 8
      %s122 = scalar_lea.vmem %s0, %s121
      %p123 = pneg %p34
      %p124 = pneg %p31
      %p125 = pneg %p55
      %p126 = pneg %p52
      %p127 = pneg %p81
      %p128 = pneg %p78
      %p129 = scmp.lt.s32.totalorder %s13, 1
      %s130 = scalar_select %p129, %s13, 1
      %s131 = smul.addr %s130, 2
      %s132 = smul.addr %s131, 8
      %s133 = scalar_lea.vmem %s2, %s132
      %p134 = scmp.lt.s32.totalorder %s13, 1
      %s135 = scalar_select %p134, %s13, 1
      %s136 = smul.addr %s135, 2
      %s137 = smul.addr %s136, 8
      %s138 = scalar_lea.vmem %s0, %s137
      %p139 = scmp.lt.s32.totalorder %s13, 1
      %s140 = scalar_select %p139, %s13, 1
      %s141 = smul.addr %s140, 2
      %s142 = smul.addr %s141, 8
      %s143 = scalar_lea.vmem %s2, %s142
      %v144 = vld [vmem:[%s138] sm:$0xff]
      %v145 = vld [vmem:[%s138 + $0x8] sm:$0xff]
      %v146 = vld [vmem:[%s1] sm:$0xff]
      %v147 = vld [vmem:[%s1 + $0x8] sm:$0xff]
      %vm148 = vcmask 64512
      %v150 = vsel %vm148, %v146, 0
      %v153 = vsel %vm148, %v147, 0
      %155 = vmatprep.subr.mxu0 %v145
      %156 = vmatpush1.msra.mxu0 %v144
      %157 = vmatprep.subr.mxu0 0.0
      %158 = vmatpush1.msra.mxu0 0.0
      %159 = vmatprep.subr.mxu0 0.0
      %160 = vmatpush1.msra.mxu0 0.0
      %161 = vmatprep.subr.mxu0 0.0
      %162 = vmatpush1.msra.mxu0 0.0
      %163 = vmatprep.subr.mxu0 0.0
      %164 = vmatpush1.msra.mxu0 0.0
      %165 = vmatprep.subr.mxu0 0.0
      %166 = vmatpush1.msra.mxu0 0.0
      %167 = vmatprep.subr.mxu0 0.0
      %168 = vmatpush1.msra.mxu0 0.0
      %169 = vmatprep.subr.mxu0 0.0
      %170 = vmatpush1.msra.mxu0 0.0
      %171 = vmatprep.subr.mxu0 0.0
      %172 = vmatpush1.msra.mxu0 0.0
      %173 = vmatprep.subr.mxu0 0.0
      %174 = vmatpush1.msra.mxu0 0.0
      %175 = vmatprep.subr.mxu0 0.0
      %176 = vmatpush1.msra.mxu0 0.0
      %177 = vmatprep.subr.mxu0 0.0
      %178 = vmatpush1.msra.mxu0 0.0
      %179 = vmatprep.subr.mxu0 0.0
      %180 = vmatpush1.msra.mxu0 0.0
      %181 = vmatprep.subr.mxu0 0.0
      %182 = vmatpush1.msra.mxu0 0.0
      %183 = vmatprep.subr.mxu0 0.0
      %184 = vmatpush1.msra.mxu0 0.0
      %185 = vmatprep.subr.mxu0 0.0
      %186 = vmatpush1.msra.mxu0 0.0
      %187 = vmatprep.subr.mxu0 0.0
      %188 = vmatpush1.msra.mxu0 0.0
      %189 = vmatprep.subr.mxu0 0.0
      %190 = vmatpush1.msra.mxu0 0.0
      %191 = vmatprep.subr.mxu0 0.0
      %192 = vmatpush1.msra.mxu0 0.0
      %193 = vmatprep.subr.mxu0 0.0
      %194 = vmatpush1.msra.mxu0 0.0
      %195 = vmatprep.subr.mxu0 0.0
      %196 = vmatpush1.msra.mxu0 0.0
      %197 = vmatprep.subr.mxu0 0.0
      %198 = vmatpush1.msra.mxu0 0.0
      %199 = vmatprep.subr.mxu0 0.0
      %200 = vmatpush1.msra.mxu0 0.0
      %201 = vmatprep.subr.mxu0 0.0
      %202 = vmatpush1.msra.mxu0 0.0
      %203 = vmatprep.subr.mxu0 0.0
      %204 = vmatpush1.msra.mxu0 0.0
      %205 = vmatprep.subr.mxu0 0.0
      %206 = vmatpush1.msra.mxu0 0.0
      %207 = vmatprep.subr.mxu0 0.0
      %208 = vmatpush1.msra.mxu0 0.0
      %209 = vmatprep.subr.mxu0 0.0
      %210 = vmatpush1.msra.mxu0 0.0
      %211 = vmatprep.subr.mxu0 0.0
      %212 = vmatpush1.msra.mxu0 0.0
      %213 = vmatprep.subr.mxu0 0.0
      %214 = vmatpush1.msra.mxu0 0.0
      %215 = vmatprep.subr.mxu0 0.0
      %216 = vmatpush1.msra.mxu0 0.0
      %217 = vmatprep.subr.mxu0 0.0
      %218 = vmatpush1.msra.mxu0 0.0
      %219 = vmatprep.mubr.f32.mxu0 0.0
      %220 = vmatmul.mubr.f32.gmra.mrb[0].mxu0 %v150
      %v221 = vpop.f32.mrb[0].mxu0
      %v222 = vadd.f32 0.0, %v221
      %v223 = vpop.f32.mrb[0].mxu0
      %v224 = vadd.f32 0.0, %v223
      %225 = vmatprep.mubr.f32.mxu0 0.0
      %226 = vmatmul.mubr.f32.gmra.mrb[0].mxu0 %v153
      %v227 = vpop.f32.mrb[0].mxu0
      %v228 = vadd.f32 0.0, %v227
      %v229 = vpop.f32.mrb[0].mxu0
      %v230 = vadd.f32 0.0, %v229
      %231 = vdwg.mxu0
      %vm232 = vcmask 1040384
      %v233 = vsel %vm232, %v228, -inf
      %v234 = vsel %vm232, %v230, -inf
      %v235 = vmax.f32 %v233, %v234
      %236 = vmax.xlane.f32.xlu0 %v235
      %v237 = vpop.xlane.xlu0 %236
      %v238 = vsub.f32 %v228, %v237
      %v239 = vsub.f32 %v230, %v237
      %v240 = vmul.f32 %v238, 1.442695
      %v241 = vpow.pop %v240
      %v242 = vmul.f32 %v239, 1.442695
      %v243 = vpow.pop %v242
      %v244 = vsel %vm232, %v241, 0.0
      %v245 = vsel %vm232, %v243, 0.0
      %v246 = vadd.f32 %v244, %v245
      %247 = vadd.xlane.f32.xlu0 %v246
      %v248 = vpop.xlane.xlu0 %247
      %v249 = vrcp.pop %v248
      %v250 = vmul.f32 %v241, %v249
      %v251 = vmul.f32 %v243, %v249
      %v252 = vlaneseq
      %v253 = vshrl.u32 %v252, 7
      %v254 = vsub.s32 0, %v253
      %v255 = vrot.slane %v250, %v254
      %v256 = vlaneseq
      %v257 = vshrl.u32 %v256, 7
      %v258 = vsub.s32 0, %v257
      %v259 = vrot.slane %v251, %v258
      %v260 = vmul.f32 %v222, %v255
      %v261 = vmul.f32 %v224, %v259
      %v262 = vadd.f32 %v260, %v261
      %263 = vadd.xlane.f32.xlu0 %v262
      %v264 = vpop.xlane.xlu0 %263
      %v265 = vmul.f32 %v222, %v264
      %v266 = vmul.f32 %v224, %v264
      %267 = vst [vmem:[%s143] sm:$0xff] %v265
      %268 = vst [vmem:[%s143 + $0x8] sm:$0xff] %v266
      %p269 = scmp.lt.s32.totalorder %s13, 1
      %s270 = scalar_select %p269, %s13, 1
      %s271 = smul.addr %s270, 2
      %s272 = smul.addr %s271, 8
      %s273 = scalar_lea.vmem %s2, %s272
      // Predicated region
      $region29: #{glaf_forward.1} parent=27 // pred_check
        %p274 = pneg %p78
      $region30: #{glaf_forward.1} parent=27 // pred_check_branch
        %276 = sbr.rel (%p274) target = $region32
      $region31: #{glaf_forward.1} parent=27 // pred_region
        _
      $region32: #{glaf_forward.1} parent=27 // pred_fallthru
        _
    $region28: #{glaf_forward.1} parent=5 // pred_fallthru
      _
    %p277 = scmp.le.s32.totalorder 2, %s8
    // Predicated region
    $region33: #{glaf_forward.1} parent=5 // pred_check
      %p278 = pneg %p277
    $region34: #{glaf_forward.1} parent=5 // pred_check_branch
      %280 = sbr.rel (%p278) target = $region36
    $region35: #{glaf_forward.1} parent=5 // pred_region
      %s281 = ssub.s32 %s8, 2
      // Predicated region
      $region37: #{glaf_forward.1} parent=35 // pred_check
        %p282 = pneg %p84
      $region38: #{glaf_forward.1} parent=35 // pred_check_branch
        %284 = sbr.rel (%p282) target = $region40
      $region39: #{glaf_forward.1} parent=35 // pred_region
        %p285 = scmp.lt.s32.totalorder %s14, 1
        %s286 = scalar_select %p285, %s14, 1
        %s287 = smul.addr %s286, 2
        %s288 = smul.addr %s287, 8
        %s289 = scalar_lea.vmem %s2, %s288
      $region40: #{glaf_forward.1} parent=35 // pred_fallthru
        _
    $region36: #{glaf_forward.1} parent=5 // pred_fallthru
      _
  $region6: #{glaf_forward.1} parent=0 // loop_footer
    %s12 = sadd.s32 1, %s8
  $region7: #{glaf_forward.1} parent=0 // loop_footer_branch
    %7 = sbr.rel target = $region3
  $region8: #{glaf_forward.1} parent=0 // loop_exit
    _

</llo_original>
